<compile_context>
chip_gen: v7x
topology: tpu7x:2x2x1
jax: 0.10.0
libtpu: 0.0.40
codegen_flags: <defaults>
</compile_context>

<pallas_src>
import functools

import jax
import jax.numpy as jnp
from jax import lax
from jax.experimental import pallas as pl
from jax.experimental.pallas import tpu as pltpu

LANES = 128                       # vreg lane width
SUBLANES = 8                      # vreg sublane depth (f32)
CHUNK_ROWS = 256                  # in-kernel accumulation chunk (bounds vreg live ranges)
DEFAULT_FASTPATH_ELEMS = 128 * 1024   # <= 1 MiB total f32 input -> pure XLA


def _cdiv(a: int, b: int) -> int:
    return -(-a // b)


def _round_up(a: int, b: int) -> int:
    return _cdiv(a, b) * b


def _device_kind() -> str:
    try:
        return jax.devices()[0].device_kind.lower()
    except Exception:
        return ""


def _default_tile_rows(kind: str) -> int:
    # 8192 rows = 4 MiB / f32 buffer -> 16 MiB double-buffered for 2 inputs:
    # fits v6e/v7x 32 MiB scoped VMEM.  v5e default scoped VMEM is 16 MiB, so
    # stay at 4096 rows (8 MiB total) there and for unknown chips.
    if "v6" in kind or "v7" in kind or "7x" in kind:
        return 8192
    return 4096


def _default_num_cores(kind: str) -> int:
    # Only v7x-class chips expose 2 TensorCores worth splitting this
    # mem-bound reduction across; on 1-TC v5e/v6e a core axis is pure waste.
    return 2 if ("v7" in kind or "7x" in kind) else 1


def _l2_loss_kernel(pred_ref, y_ref, out_ref, acc_ref, *,
                    rows, tile_rows, chunk_rows, tiles_per_core, need_mask):
    # pred_ref, y_ref : (tile_rows, 128) VMEM tiles
    # out_ref         : (1, 1, 1) per-core scalar partial sum
    # acc_ref         : (8, 128) f32 VMEM accumulator (persists across k)
    k = pl.program_id(1)

    @pl.when(k == 0)
    def _init():
        acc_ref[...] = jnp.zeros_like(acc_ref)

    tile_start = (pl.program_id(0) * tiles_per_core + k) * tile_rows
    n_chunks = tile_rows // chunk_rows

    def _chunk(c, carry):
        r0 = pl.multiple_of(c * chunk_rows, chunk_rows)
        a = pred_ref[pl.ds(r0, chunk_rows), :].astype(jnp.float32)
        b = y_ref[pl.ds(r0, chunk_rows), :].astype(jnp.float32)
        d = a - b
        sq = d * d
        if need_mask:
            # Zero out rows past the logical end (ragged tail / OOB tile rows).
            row_ids = lax.broadcasted_iota(jnp.int32, sq.shape, 0)
            global_rows = row_ids + (tile_start + r0)
            sq = jnp.where(global_rows < rows, sq, 0.0)
        # (chunk_rows,128) -> (8,128) with vreg-aligned VPU adds only.
        acc_ref[...] += jnp.sum(sq.reshape(-1, SUBLANES, LANES), axis=0)
        return carry

    lax.fori_loop(0, n_chunks, _chunk, 0)

    @pl.when(k == pl.num_programs(1) - 1)
    def _finalize():
        part = jnp.sum(acc_ref[...], axis=0, keepdims=True)   # (1, 128) sublane collapse
        out_ref[0] = jnp.sum(part, axis=1, keepdims=True)     # (1, 1)   lane collapse


def l2_loss(pred: jax.Array, y: jax.Array, *,
            max_tile_rows: int | None = None,
            num_cores: int | None = None,
            min_pallas_elems: int = DEFAULT_FASTPATH_ELEMS) -> jax.Array:
    assert pred.shape == y.shape, "pred and y shape is different in l2 loss"
    assert pred.ndim == 2
    assert y.shape[1] == 1
    n = pred.shape[0]

    def _xla_loss(a, b):
        d = a.astype(jnp.float32) - b.astype(jnp.float32)
        return jnp.sum(d * d) / n

    # Small-N fast path: pallas_call launch / pipeline priming dominates there.
    if n <= max(int(min_pallas_elems), 0) or n < LANES:
        return _xla_loss(pred, y)

    kind = _device_kind()
    if max_tile_rows is None:
        max_tile_rows = _default_tile_rows(kind)
    if num_cores is None:
        num_cores = _default_num_cores(kind)

    # Largest lane-aligned prefix goes through Pallas; the <=127-element
    # remainder is a tiny XLA term.  When N % 128 == 0 (common large-N case)
    # the reshape below is a free bitcast -> zero extra HBM traffic.
    main = (n // LANES) * LANES
    rem = n - main
    rows = main // LANES

    pred_flat = pred.reshape(-1)
    y_flat = y.reshape(-1)
    if rem:
        # TODO(synk): a fully copy-free ragged path would need 1-D blocking;
        # this prefix slice only triggers when N % 128 != 0 and is still much
        # cheaper than the old full jnp.pad materialization.
        pred_main = pred_flat[:main]
        y_main = y_flat[:main]
    else:
        pred_main = pred_flat
        y_main = y_flat
    pred2d = pred_main.reshape(rows, LANES)
    y2d = y_main.reshape(rows, LANES)

    # --- tile geometry -------------------------------------------------------
    tile_rows = min(int(max_tile_rows), _round_up(rows, 16))
    tile_rows = _round_up(tile_rows, 16)          # safe for f32 & bf16 tiling
    if tile_rows > CHUNK_ROWS:
        tile_rows = _round_up(tile_rows, CHUNK_ROWS)
        chunk_rows = CHUNK_ROWS
    else:
        chunk_rows = tile_rows

    num_tiles = _cdiv(rows, tile_rows)
    num_cores = max(1, min(int(num_cores), num_tiles))
    tiles_per_core = _cdiv(num_tiles, num_cores)
    padded_tiles = num_cores * tiles_per_core
    need_mask = (padded_tiles * tile_rows) != rows
    need_clamp = padded_tiles != num_tiles
    last_tile = num_tiles - 1

    def in_map(p, k):
        t = p * tiles_per_core + k
        if need_clamp:
            # Keep the DMA in bounds for logically-empty trailing tiles; their
            # contribution is zeroed by the in-kernel row mask.
            t = jnp.minimum(t, last_tile)
        return (t, 0)

    kernel = functools.partial(
        _l2_loss_kernel, rows=rows, tile_rows=tile_rows, chunk_rows=chunk_rows,
        tiles_per_core=tiles_per_core, need_mask=need_mask)

    if num_cores > 1:
        core_sem = getattr(pltpu, "CORE_PARALLEL", pltpu.PARALLEL)
    else:
        core_sem = pltpu.ARBITRARY
    dims = (core_sem, pltpu.ARBITRARY)

    partial_sums = pl.pallas_call(
        kernel,
        out_shape=jax.ShapeDtypeStruct((num_cores, 1, 1), jnp.float32),
        grid_spec=pltpu.PrefetchScalarGridSpec(
            num_scalar_prefetch=0,
            grid=(num_cores, tiles_per_core),
            in_specs=[
                pl.BlockSpec((tile_rows, LANES), in_map),
                pl.BlockSpec((tile_rows, LANES), in_map),
            ],
            out_specs=pl.BlockSpec((1, 1, 1), lambda p, k: (p, 0, 0)),
            scratch_shapes=[pltpu.VMEM((SUBLANES, LANES), jnp.float32)],
        ),
        compiler_params=pltpu.CompilerParams(dimension_semantics=dims),
    )(pred2d, y2d)

    total = jnp.sum(partial_sums)
    if rem:
        dt = pred_flat[main:].astype(jnp.float32) - y_flat[main:].astype(jnp.float32)
        total = total + jnp.sum(dt * dt)

    # TODO(synk): the module's .item() python-float conversion and backward()
    # (2*(pred-y)) are host-side / autograd concerns, not part of this kernel.
    return total / n


if __name__ == "__main__":
    key = jax.random.PRNGKey(0)
    k1, k2, k3, k4, k5, k6 = jax.random.split(key, 6)

    # 1) Tiny (N, 1) case matching the module contract -> XLA fast path.
    n1 = 8
    p1 = jax.random.normal(k1, (n1, 1), dtype=jnp.float32)
    y1 = jax.random.normal(k2, (n1, 1), dtype=jnp.float32)
    out1 = jax.block_until_ready(l2_loss(p1, y1))
    ref1 = jnp.sum(jnp.square(p1 - y1)) / n1
    assert jnp.allclose(out1, ref1, rtol=1e-6, atol=1e-6), (out1, ref1)

    # 2) Ragged case forcing the Pallas path: multi-tile, multi-chunk in-kernel
    #    accumulation, row masking of the partial last tile and the <128-element
    #    XLA remainder (still only ~300 KiB per input).
    n2 = 576 * LANES + 5
    p2 = jax.random.normal(k3, (n2, 1), dtype=jnp.float32)
    y2 = jax.random.normal(k4, (n2, 1), dtype=jnp.float32)
    out2 = jax.block_until_ready(
        l2_loss(p2, y2, max_tile_rows=512, min_pallas_elems=0))
    ref2 = jnp.sum(jnp.square(p2 - y2)) / n2
    assert jnp.allclose(out2, ref2, rtol=1e-4, atol=1e-5), (out2, ref2)

    # 3) Exactly tile-aligned case (zero-copy reshape, no masking, no remainder).
    n3 = 512 * LANES
    p3 = jax.random.normal(k5, (n3, 1), dtype=jnp.float32)
    y3 = jax.random.normal(k6, (n3, 1), dtype=jnp.float32)
    out3 = jax.block_until_ready(
        l2_loss(p3, y3, max_tile_rows=256, min_pallas_elems=0))
    ref3 = jnp.sum(jnp.square(p3 - y3)) / n3
    assert jnp.allclose(out3, ref3, rtol=1e-4, atol=1e-5), (out3, ref3)

    print("KERNEL_OK")
</pallas_src>

<mosaic_0001>
module attributes {stable_mosaic.version = 11 : i64} {
  func.func @_l2_loss_kernel(%arg0: i32, %arg1: i32, %arg2: memref<512x128xf32, #tpu.memory_space<vmem>>, %arg3: memref<512x128xf32, #tpu.memory_space<vmem>>, %arg4: memref<1x1x1xf32, #tpu.memory_space<vmem>>, %arg5: memref<8x128xf32, #tpu.memory_space<vmem>>) attributes {dimension_semantics = [#tpu.dimension_semantics<arbitrary>, #tpu.dimension_semantics<arbitrary>], iteration_bounds = array<i64: 1, 2>, scalar_prefetch = 0 : i64, scratch_operands = 1 : i64, tpu.core_type = #tpu.core_type<tc>, window_params = [{transform_indices = @transform_0, window_bounds = array<i64: 512, 128>}, {transform_indices = @transform_1, window_bounds = array<i64: 512, 128>}, {transform_indices = @transform_2, window_bounds = array<i64: 1, 1, 1>}]} {
    %c0_i32 = arith.constant 0 : i32
    %0 = arith.cmpi eq, %arg1, %c0_i32 : i32
    %1 = arith.extui %0 : i1 to i32
    %c0_i32_0 = arith.constant 0 : i32
    %2 = arith.cmpi ne, %1, %c0_i32_0 : i32
    scf.if %2 {
      %cst = arith.constant 0.000000e+00 : f32
      %10 = vector.broadcast %cst : f32 to vector<8x128xf32>
      %c0 = arith.constant 0 : index
      %c0_6 = arith.constant 0 : index
      %11 = vector.load %arg5[%c0, %c0_6] : memref<8x128xf32, #tpu.memory_space<vmem>>, vector<8x128xf32>
      tpu.vector_store %arg5[%c0, %c0_6], %10 {strides = array<i32>} : memref<8x128xf32, #tpu.memory_space<vmem>>, vector<8x128xf32>,
    } else {
    }
    %c2_i32 = arith.constant 2 : i32
    %3 = arith.muli %arg0, %c2_i32 : i32
    %4 = arith.addi %3, %arg1 : i32
    %c512_i32 = arith.constant 512 : i32
    %5 = arith.muli %4, %c512_i32 : i32
    %c0_i32_1 = arith.constant 0 : i32
    %c2_i32_2 = arith.constant 2 : i32
    %6 = arith.addi %c0_i32_1, %c2_i32_2 : i32
    %c1_i32 = arith.constant 1 : i32
    scf.for %arg6 = %c0_i32_1 to %6 step %c1_i32  : i32 {
      %c256_i32 = arith.constant 256 : i32
      %10 = arith.muli %arg6, %c256_i32 : i32
      %11 = tpu.assume_multiple %10, 256 : i32
      %12 = arith.index_cast %11 : i32 to index
      %c0 = arith.constant 0 : index
      %13 = vector.load %arg2[%12, %c0] : memref<512x128xf32, #tpu.memory_space<vmem>>, vector<256x128xf32>
      %14 = arith.index_cast %11 : i32 to index
      %c0_6 = arith.constant 0 : index
      %15 = vector.load %arg3[%14, %c0_6] : memref<512x128xf32, #tpu.memory_space<vmem>>, vector<256x128xf32>
      %16 = arith.subf %13, %15 : vector<256x128xf32>
      %17 = arith.mulf %16, %16 : vector<256x128xf32>
      %18 = tpu.iota {dimensions = array<i32: 0>} : vector<256x128xi32>
      %19 = arith.addi %5, %11 : i32
      %20 = vector.broadcast %19 : i32 to vector<256x128xi32>
      %21 = arith.addi %18, %20 : vector<256x128xi32>
      %c576_i32 = arith.constant 576 : i32
      %22 = vector.broadcast %c576_i32 : i32 to vector<256x128xi32>
      %23 = arith.cmpi slt, %21, %22 : vector<256x128xi32>
      %cst = arith.constant 0.000000e+00 : f32
      %24 = vector.broadcast %cst : f32 to vector<256x128xf32>
      %25 = arith.select %23, %17, %24 : vector<256x128xi1>, vector<256x128xf32>
      %c0_7 = arith.constant 0 : index
      %c0_8 = arith.constant 0 : index
      %26 = vector.load %arg5[%c0_7, %c0_8] : memref<8x128xf32, #tpu.memory_space<vmem>>, vector<8x128xf32>
      %27 = vector.shape_cast %25 : vector<256x128xf32> to vector<32x8x128xf32>
      %cst_9 = arith.constant dense<0.000000e+00> : vector<8x128xf32>
      %28 = vector.multi_reduction <add>, %27, %cst_9 [0] : vector<32x8x128xf32> to vector<8x128xf32>
      %29 = arith.addf %26, %28 : vector<8x128xf32>
      %c0_10 = arith.constant 0 : index
      %c0_11 = arith.constant 0 : index
      %30 = vector.load %arg5[%c0_10, %c0_11] : memref<8x128xf32, #tpu.memory_space<vmem>>, vector<8x128xf32>
      tpu.vector_store %arg5[%c0_10, %c0_11], %29 {strides = array<i32>} : memref<8x128xf32, #tpu.memory_space<vmem>>, vector<8x128xf32>,
    }
    %c2_i32_3 = arith.constant 2 : i32
    %c1_i32_4 = arith.constant 1 : i32
    %7 = arith.cmpi eq, %arg1, %c1_i32_4 : i32
    %8 = arith.extui %7 : i1 to i32
    %c0_i32_5 = arith.constant 0 : i32
    %9 = arith.cmpi ne, %8, %c0_i32_5 : i32
    scf.if %9 {
      %c0 = arith.constant 0 : index
      %c0_6 = arith.constant 0 : index
      %10 = vector.load %arg5[%c0, %c0_6] : memref<8x128xf32, #tpu.memory_space<vmem>>, vector<8x128xf32>
      %cst = arith.constant dense<0.000000e+00> : vector<128xf32>
      %11 = vector.multi_reduction <add>, %10, %cst [0] : vector<8x128xf32> to vector<128xf32>
      %12 = vector.shape_cast %11 : vector<128xf32> to vector<1x128xf32>
      %cst_7 = arith.constant dense<0.000000e+00> : vector<1xf32>
      %13 = vector.multi_reduction <add>, %12, %cst_7 [1] : vector<1x128xf32> to vector<1xf32>
      %14 = vector.shape_cast %13 : vector<1xf32> to vector<1x1xf32>
      %c0_8 = arith.constant 0 : index
      %c0_9 = arith.constant 0 : index
      %c0_10 = arith.constant 0 : index
      %15 = vector.load %arg4[%c0_8, %c0_9, %c0_10] : memref<1x1x1xf32, #tpu.memory_space<vmem>>, vector<1x1x1xf32>
      %16 = vector.shape_cast %15 : vector<1x1x1xf32> to vector<1x1xf32>
      %17 = vector.shape_cast %14 : vector<1x1xf32> to vector<1x1x1xf32>
      tpu.vector_store %arg4[%c0_8, %c0_9, %c0_10], %17 {strides = array<i32>} : memref<1x1x1xf32, #tpu.memory_space<vmem>>, vector<1x1x1xf32>,
    } else {
    }
    return
  }
  func.func @transform_0(%arg0: i32, %arg1: i32) -> (i32, i32) {
    %c2_i32 = arith.constant 2 : i32
    %0 = arith.muli %arg0, %c2_i32 : i32
    %1 = arith.addi %0, %arg1 : i32
    %c0_i32 = arith.constant 0 : i32
    %c0_i32_0 = arith.constant 0 : i32
    return %1, %c0_i32 : i32, i32
  }
  func.func @transform_1(%arg0: i32, %arg1: i32) -> (i32, i32) {
    %c2_i32 = arith.constant 2 : i32
    %0 = arith.muli %arg0, %c2_i32 : i32
    %1 = arith.addi %0, %arg1 : i32
    %c0_i32 = arith.constant 0 : i32
    %c0_i32_0 = arith.constant 0 : i32
    return %1, %c0_i32 : i32, i32
  }
  func.func @transform_2(%arg0: i32, %arg1: i32) -> (i32, i32, i32) {
    %c0_i32 = arith.constant 0 : i32
    %c0_i32_0 = arith.constant 0 : i32
    %c0_i32_1 = arith.constant 0 : i32
    return %arg0, %c0_i32, %c0_i32_0 : i32, i32, i32
  }
}

</mosaic_0001>

<llo_original>
// kernel: tpu_custom_call.1
$region0: #{tpu_custom_call.1}
  #allocation0 [shape = 'u32[]', space=smem, size = 0x4, offset = 0x4, fixed_abs, tag = 'smem constant byte address 0x4 - core index']
  #allocation1 [shape = 'u32[144,128]{1,0:T(1,128)}', space=vmem, size = 0x12000, scoped, tag = 'internal scratch']
  #allocation2 [shape = 'f32[8,128]{1,0:T(8,128)}', space=vmem, size = 0x1000, scoped, tag = 'scratch operand']
  %s0 = inlined_call_operand.hbm [shape: f32[576,128], index: 0, kind: input, shape index: {}]
  %s1 = inlined_call_operand.hbm [shape: f32[576,128], index: 1, kind: input, shape index: {}]
  %s2 = inlined_call_operand.hbm [shape: f32[1,1,1], index: 2, kind: output, shape index: {}]
  %s3 = sld [smem:[#allocation0]]
  $region64: #{tpu_custom_call.1} parent=0
    _
  %s5 = ssub.s32 1, %s3
  %s6 = scalar_select 0, %s5, %s3
  $region1: #{tpu_custom_call.1} parent=0
    #allocation3 [shape = 'u8[524288]{0}', space=vmem, size = 0x80000, scoped, tag = 'input window, operand 0']
    #allocation4 [shape = 's32[2]{0}', space=sflag, size = 0x8, scoped, tag = 'scoped memory for tpu_custom_call.1']
    #allocation5 [shape = 's32[2]{0}', space=sflag, size = 0x8, scoped, tag = 'scoped memory for tpu_custom_call.1']
    #allocation6 [shape = 'u8[524288]{0}', space=vmem, size = 0x80000, scoped, tag = 'input window, operand 1']
    #allocation7 [shape = 's32[2]{0}', space=sflag, size = 0x8, scoped, tag = 'scoped memory for tpu_custom_call.1']
    #allocation8 [shape = 'u8[512]{0}', space=vmem, size = 0x400, scoped, tag = 'output window, operand 0, single buffered']
    %7 = vsyncpa [#allocation4], 0
    %s8 = scalar_lea.sflag [#allocation4], 1
    %9 = vsyncpa %s8, 0
    %10 = vsyncpa [#allocation7], 0
    %s11 = scalar_lea.sflag [#allocation7], 1
    %12 = vsyncpa %s11, 0
    %13 = vsyncpa [#allocation5], 0
    loop: start=0, step=1, limit=4
    $region2: #{tpu_custom_call.1} parent=1 // loop_pre_header
      _
    $region3: #{tpu_custom_call.1} parent=1 // loop_header
      %s15 = sphi 0, %s19
      %p16 = scmp.ge.s32.totalorder %s15, 4
      %s22 = sphi 0, %s34
      %s23 = sphi 0, %s30
      %s24 = sphi 0, %s22
      %s25 = sphi 0, %s23
      %s26 = sphi 0, %s24
      %s27 = sphi 0, %s25
      %s41 = sphi 0, %s43
      %s44 = sphi 0, %s41
      %s45 = sphi 0, %s44
      %s61 = sphi 0, %s45
      %s71 = sphi 0, %s73
      %s74 = sphi 0, %s71
      %s75 = sphi 0, %s74
      %s91 = sphi 0, %s75
      %s97 = sphi 0, %s99
      %s100 = sphi 0, %s97
      %s101 = sphi 0, %s100
      %s117 = sphi 0, %s101
    $region4: #{tpu_custom_call.1} parent=1 // loop_header_branch
      %18 = sbr.rel (%p16) target = $region8
    $region5: #{tpu_custom_call.1} parent=1 // loop_body
      %s20 = ssub.s32 %s15, 1
      %s21 = ssub.s32 %s15, 2
      %s28 = sadd.s32 1, %s23
      %p29 = scmp.ge.s32.totalorder %s28, 2
      %s30 = scalar_select %p29, 0, %s28
      %s31 = sadd.s32 1, %s22
      %s32 = scalar_select %p29, %s31, %s22
      %p33 = scmp.ge.s32.totalorder %s32, 1
      %s34 = scalar_select %p33, 0, %s32
      %s35 = smul.u32 %s22, 2
      %s36 = sadd.s32 %s35, %s23
      %s37 = smul.u32 %s34, 2
      %s38 = sadd.s32 %s37, %s30
      %s39 = ssub.s32 %s36, %s38
      %p40 = scmp.eq.s32.totalorder %s39, 0
      %s42 = sadd.s32 %s41, 1
      %s43 = scalar_select %p40, %s41, %s42
      %p46 = pneg %p40
      %p47 = scmp.eq.s32.totalorder %s15, 1
      %p48 = por %p46, %p47
      %p49 = scmp.ne.s32.totalorder %s41, %s44
      %p50 = scmp.eq.s32.totalorder %s15, 0
      %p51 = por %p49, %p50
      %p52 = scmp.ne.s32.totalorder %s41, %s44
      %p53 = scmp.eq.s32.totalorder %s20, 1
      %p54 = por %p52, %p53
      %p55 = scmp.ne.s32.totalorder %s44, %s45
      %p56 = scmp.eq.s32.totalorder %s20, 0
      %p57 = por %p55, %p56
      %p58 = scmp.ne.s32.totalorder %s44, %s45
      %p59 = scmp.eq.s32.totalorder %s21, 1
      %p60 = por %p58, %p59
      %p62 = scmp.ne.s32.totalorder %s45, %s61
      %p63 = scmp.eq.s32.totalorder %s21, 0
      %p64 = por %p62, %p63
      %s65 = smul.u32 %s22, 2
      %s66 = sadd.s32 %s65, %s23
      %s67 = smul.u32 %s34, 2
      %s68 = sadd.s32 %s67, %s30
      %s69 = ssub.s32 %s66, %s68
      %p70 = scmp.eq.s32.totalorder %s69, 0
      %s72 = sadd.s32 %s71, 1
      %s73 = scalar_select %p70, %s71, %s72
      %p76 = pneg %p70
      %p77 = scmp.eq.s32.totalorder %s15, 1
      %p78 = por %p76, %p77
      %p79 = scmp.ne.s32.totalorder %s71, %s74
      %p80 = scmp.eq.s32.totalorder %s15, 0
      %p81 = por %p79, %p80
      %p82 = scmp.ne.s32.totalorder %s71, %s74
      %p83 = scmp.eq.s32.totalorder %s20, 1
      %p84 = por %p82, %p83
      %p85 = scmp.ne.s32.totalorder %s74, %s75
      %p86 = scmp.eq.s32.totalorder %s20, 0
      %p87 = por %p85, %p86
      %p88 = scmp.ne.s32.totalorder %s74, %s75
      %p89 = scmp.eq.s32.totalorder %s21, 1
      %p90 = por %p88, %p89
      %p92 = scmp.ne.s32.totalorder %s75, %s91
      %p93 = scmp.eq.s32.totalorder %s21, 0
      %p94 = por %p92, %p93
      %s95 = ssub.s32 %s22, %s34
      %p96 = scmp.eq.s32.totalorder %s95, 0
      %s98 = sadd.s32 %s97, 1
      %s99 = scalar_select %p96, %s97, %s98
      %p102 = pneg %p96
      %p103 = scmp.eq.s32.totalorder %s15, 1
      %p104 = por %p102, %p103
      %p105 = scmp.ne.s32.totalorder %s97, %s100
      %p106 = scmp.eq.s32.totalorder %s15, 0
      %p107 = por %p105, %p106
      %p108 = scmp.ne.s32.totalorder %s97, %s100
      %p109 = scmp.eq.s32.totalorder %s20, 1
      %p110 = por %p108, %p109
      %p111 = scmp.ne.s32.totalorder %s100, %s101
      %p112 = scmp.eq.s32.totalorder %s20, 0
      %p113 = por %p111, %p112
      %p114 = scmp.ne.s32.totalorder %s100, %s101
      %p115 = scmp.eq.s32.totalorder %s21, 1
      %p116 = por %p114, %p115
      %p118 = scmp.ne.s32.totalorder %s101, %s117
      %p119 = scmp.eq.s32.totalorder %s21, 0
      %p120 = por %p118, %p119
      %p121 = scmp.le.s32.totalorder 1, %s15
      %p122 = scmp.lt.s32.totalorder %s15, 3
      %p123 = pnand %p121, %p122
      %p124 = pneg %p123
      // Predicated region
      $region9: #{tpu_custom_call.1} parent=5 // pred_check
        _
      $region10: #{tpu_custom_call.1} parent=5 // pred_check_branch
        %126 = sbr.rel (%p123) target = $region12
      $region11: #{tpu_custom_call.1} parent=5 // pred_region
        %s127 = ssub.s32 %s15, 1
      $region12: #{tpu_custom_call.1} parent=5 // pred_fallthru
        _
      %p128 = scmp.lt.s32.totalorder %s15, 2
      // Predicated region
      $region13: #{tpu_custom_call.1} parent=5 // pred_check
        %p129 = pneg %p128
      $region14: #{tpu_custom_call.1} parent=5 // pred_check_branch
        %131 = sbr.rel (%p129) target = $region16
      $region15: #{tpu_custom_call.1} parent=5 // pred_region
        // Predicated region
        $region17: #{tpu_custom_call.1} parent=15 // pred_check
          %p132 = pneg %p51
        $region18: #{tpu_custom_call.1} parent=15 // pred_check_branch
          %134 = sbr.rel (%p132) target = $region20
        $region19: #{tpu_custom_call.1} parent=15 // pred_region
          %s135 = sand.u32 %s41, 1
          %s136 = scalar_lea.sflag [#allocation4], %s135
          %s137 = sand.u32 %s41, 1
          %s138 = smul.addr %s137, 512
          %s139 = scalar_lea.vmem [#allocation3], %s138
          %s140 = smul.u32 %s22, 2
          %s141 = sadd.s32 %s140, %s23
          %s142 = smul.u32 64, %s141
          %s143 = ssub.s32 72, %s142
          %p144 = scmp.lt.s32.totalorder %s143, 64
          %s145 = scalar_select %p144, %s143, 64
          %s146 = smul.u32 128, %s145
          %s148 = ssub.s32 8192, %s146
          %149 = vsyncadd %s136, %s148
          %p150 = scmp.ne.s32.totalorder 0, %s146
          %s151 = smul.addr %s142, 128
          %s152 = scalar_lea.hbm %s0, %s151
          %s153 = smul.u32 8, %s145
          %s154 = sshll.u32 %s139, 4
          %s155 = int_to_ptr.vmem [resolvable:$true] %s154
          %s156 = sshll.u32 %s153, 4
          %160 = dma.hbm_to_vmem [thread:$0]  (%p150), %s152, %s156, %s155, %s136, 128, 128, 8
        $region20: #{tpu_custom_call.1} parent=15 // pred_fallthru
          _
        // Predicated region
        $region21: #{tpu_custom_call.1} parent=15 // pred_check
          %p161 = pneg %p81
        $region22: #{tpu_custom_call.1} parent=15 // pred_check_branch
          %163 = sbr.rel (%p161) target = $region24
        $region23: #{tpu_custom_call.1} parent=15 // pred_region
          %s164 = sand.u32 %s71, 1
          %s165 = scalar_lea.sflag [#allocation7], %s164
          %s166 = sand.u32 %s71, 1
          %s167 = smul.addr %s166, 512
          %s168 = scalar_lea.vmem [#allocation6], %s167
          %s169 = smul.u32 %s22, 2
          %s170 = sadd.s32 %s169, %s23
          %s171 = smul.u32 64, %s170
          %s172 = ssub.s32 72, %s171
          %p173 = scmp.lt.s32.totalorder %s172, 64
          %s174 = scalar_select %p173, %s172, 64
          %s175 = smul.u32 128, %s174
          %s177 = ssub.s32 8192, %s175
          %178 = vsyncadd %s165, %s177
          %p179 = scmp.ne.s32.totalorder 0, %s175
          %s180 = smul.addr %s171, 128
          %s181 = scalar_lea.hbm %s1, %s180
          %s182 = smul.u32 8, %s174
          %s183 = sshll.u32 %s168, 4
          %s184 = int_to_ptr.vmem [resolvable:$true] %s183
          %s185 = sshll.u32 %s182, 4
          %189 = dma.hbm_to_vmem [thread:$0]  (%p179), %s181, %s185, %s184, %s165, 128, 128, 8
        $region24: #{tpu_custom_call.1} parent=15 // pred_fallthru
          _
      $region16: #{tpu_custom_call.1} parent=5 // pred_fallthru
        _
      %p190 = scmp.le.s32.totalorder 1, %s15
      %p191 = scmp.lt.s32.totalorder %s15, 3
      %p192 = pnand %p190, %p191
      %p193 = pneg %p192
      // Predicated region
      $region25: #{tpu_custom_call.1} parent=5 // pred_check
        _
      $region26: #{tpu_custom_call.1} parent=5 // pred_check_branch
        %195 = sbr.rel (%p192) target = $region28
      $region27: #{tpu_custom_call.1} parent=5 // pred_region
        %s196 = ssub.s32 %s15, 1
        %s197 = sand.u32 %s44, 1
        %s198 = scalar_lea.sflag [#allocation4], %s197
        %s199 = sand.u32 %s44, 1
        %s200 = smul.addr %s199, 512
        %s201 = scalar_lea.vmem [#allocation3], %s200
        // Predicated region
        $region29: #{tpu_custom_call.1} parent=27 // pred_check
          %p202 = pneg %p57
        $region30: #{tpu_custom_call.1} parent=27 // pred_check_branch
          %204 = sbr.rel (%p202) target = $region32
        $region31: #{tpu_custom_call.1} parent=27 // pred_region
          %205 = dma.done %s198, 8192
        $region32: #{tpu_custom_call.1} parent=27 // pred_fallthru
          _
        %s206 = sand.u32 %s74, 1
        %s207 = scalar_lea.sflag [#allocation7], %s206
        %s208 = sand.u32 %s74, 1
        %s209 = smul.addr %s208, 512
        %s210 = scalar_lea.vmem [#allocation6], %s209
        // Predicated region
        $region33: #{tpu_custom_call.1} parent=27 // pred_check
          %p211 = pneg %p87
        $region34: #{tpu_custom_call.1} parent=27 // pred_check_branch
          %213 = sbr.rel (%p211) target = $region36
        $region35: #{tpu_custom_call.1} parent=27 // pred_region
          %214 = dma.done %s207, 8192
        $region36: #{tpu_custom_call.1} parent=27 // pred_fallthru
          _
        %s215 = sand.u32 %s44, 1
        %s216 = scalar_lea.sflag [#allocation4], %s215
        %s217 = sand.u32 %s44, 1
        %s218 = smul.addr %s217, 512
        %s219 = scalar_lea.vmem [#allocation3], %s218
        %p220 = pneg %p57
        %p221 = pneg %p54
        %s222 = sand.u32 %s74, 1
        %s223 = scalar_lea.sflag [#allocation7], %s222
        %s224 = sand.u32 %s74, 1
        %s225 = smul.addr %s224, 512
        %s226 = scalar_lea.vmem [#allocation6], %s225
        %p227 = pneg %p87
        %p228 = pneg %p84
        %p229 = pneg %p113
        %p230 = pneg %p110
        %s231 = smul.u32 %s24, 2
        %s232 = sadd.s32 %s231, %s25
        %s233 = smul.u32 64, %s232
        %s234 = ssub.s32 72, %s233
        %p235 = scmp.lt.s32.totalorder %s234, 64
        %s236 = scalar_select %p235, %s234, 64
        %s237 = smul.u32 128, %s236
        %s238 = smul.u32 %s24, 2
        %s239 = sadd.s32 %s238, %s25
        %s240 = smul.u32 64, %s239
        %s241 = ssub.s32 72, %s240
        %p242 = scmp.lt.s32.totalorder %s241, 64
        %s243 = scalar_select %p242, %s241, 64
        %s244 = smul.u32 128, %s243
        %p245 = scmp.eq.s32.totalorder %s25, 0
        // Predicated region
        $region37: #{tpu_custom_call.1} parent=27 // pred_check
          %p246 = pneg %p245
        $region38: #{tpu_custom_call.1} parent=27 // pred_check_branch
          %248 = sbr.rel (%p246) target = $region40
        $region39: #{tpu_custom_call.1} parent=27 // pred_region
          %249 = vst [vmem:[#allocation2] sm:$0xff] 0.0
        $region40: #{tpu_custom_call.1} parent=27 // pred_fallthru
          _
        %s250 = smul.u32 %s24, 2
        %s251 = sadd.s32 %s250, %s25
        %s252 = smul.u32 %s251, 512
        loop: start=0, step=1, limit=2
        $region41: #{tpu_custom_call.1} parent=27 // loop_pre_header
          _
        $region42: #{tpu_custom_call.1} parent=27 // loop_header
          %s254 = sphi 0, %s258
          %p255 = scmp.ge.s32.totalorder %s254, 2
        $region43: #{tpu_custom_call.1} parent=27 // loop_header_branch
          %257 = sbr.rel (%p255) target = $region47
        $region44: #{tpu_custom_call.1} parent=27 // loop_body
          %s259 = smul.u32 %s254, 256
          %s260 = scalar_lea.vmem %s201, %s259 [#allocation3]
          %v261 = vld [vmem:[%s260] sm:$0xff]
          %v262 = vld [vmem:[%s260 + $0x8] sm:$0xff]
          %v263 = vld [vmem:[%s260 + $0x10] sm:$0xff]
          %v264 = vld [vmem:[%s260 + $0x18] sm:$0xff]
          %v265 = vld [vmem:[%s260 + $0x20] sm:$0xff]
          %v266 = vld [vmem:[%s260 + $0x28] sm:$0xff]
          %v267 = vld [vmem:[%s260 + $0x30] sm:$0xff]
          %v268 = vld [vmem:[%s260 + $0x38] sm:$0xff]
          %v269 = vld [vmem:[%s260 + $0x40] sm:$0xff]
          %v270 = vld [vmem:[%s260 + $0x48] sm:$0xff]
          %v271 = vld [vmem:[%s260 + $0x50] sm:$0xff]
          %v272 = vld [vmem:[%s260 + $0x58] sm:$0xff]
          %v273 = vld [vmem:[%s260 + $0x60] sm:$0xff]
          %v274 = vld [vmem:[%s260 + $0x68] sm:$0xff]
          %v275 = vld [vmem:[%s260 + $0x70] sm:$0xff]
          %v276 = vld [vmem:[%s260 + $0x78] sm:$0xff]
          %v277 = vld [vmem:[%s260 + $0x80] sm:$0xff]
          %v278 = vld [vmem:[%s260 + $0x88] sm:$0xff]
          %v279 = vld [vmem:[%s260 + $0x90] sm:$0xff]
          %v280 = vld [vmem:[%s260 + $0x98] sm:$0xff]
          %v281 = vld [vmem:[%s260 + $0xa0] sm:$0xff]
          %v282 = vld [vmem:[%s260 + $0xa8] sm:$0xff]
          %v283 = vld [vmem:[%s260 + $0xb0] sm:$0xff]
          %v284 = vld [vmem:[%s260 + $0xb8] sm:$0xff]
          %v285 = vld [vmem:[%s260 + $0xc0] sm:$0xff]
          %v286 = vld [vmem:[%s260 + $0xc8] sm:$0xff]
          %v287 = vld [vmem:[%s260 + $0xd0] sm:$0xff]
          %v288 = vld [vmem:[%s260 + $0xd8] sm:$0xff]
          %v289 = vld [vmem:[%s260 + $0xe0] sm:$0xff]
          %v290 = vld [vmem:[%s260 + $0xe8] sm:$0xff]
          %v291 = vld [vmem:[%s260 + $0xf0] sm:$0xff]
          %v292 = vld [vmem:[%s260 + $0xf8] sm:$0xff]
          %s293 = scalar_lea.vmem %s210, %s259 [#allocation6]
          %v294 = vld [vmem:[%s293] sm:$0xff]
          %v295 = vld [vmem:[%s293 + $0x8] sm:$0xff]
          %v296 = vld [vmem:[%s293 + $0x10] sm:$0xff]
          %v297 = vld [vmem:[%s293 + $0x18] sm:$0xff]
          %v298 = vld [vmem:[%s293 + $0x20] sm:$0xff]
          %v299 = vld [vmem:[%s293 + $0x28] sm:$0xff]
          %v300 = vld [vmem:[%s293 + $0x30] sm:$0xff]
          %v301 = vld [vmem:[%s293 + $0x38] sm:$0xff]
          %v302 = vld [vmem:[%s293 + $0x40] sm:$0xff]
          %v303 = vld [vmem:[%s293 + $0x48] sm:$0xff]
          %v304 = vld [vmem:[%s293 + $0x50] sm:$0xff]
          %v305 = vld [vmem:[%s293 + $0x58] sm:$0xff]
          %v306 = vld [vmem:[%s293 + $0x60] sm:$0xff]
          %v307 = vld [vmem:[%s293 + $0x68] sm:$0xff]
          %v308 = vld [vmem:[%s293 + $0x70] sm:$0xff]
          %v309 = vld [vmem:[%s293 + $0x78] sm:$0xff]
          %v310 = vld [vmem:[%s293 + $0x80] sm:$0xff]
          %v311 = vld [vmem:[%s293 + $0x88] sm:$0xff]
          %v312 = vld [vmem:[%s293 + $0x90] sm:$0xff]
          %v313 = vld [vmem:[%s293 + $0x98] sm:$0xff]
          %v314 = vld [vmem:[%s293 + $0xa0] sm:$0xff]
          %v315 = vld [vmem:[%s293 + $0xa8] sm:$0xff]
          %v316 = vld [vmem:[%s293 + $0xb0] sm:$0xff]
          %v317 = vld [vmem:[%s293 + $0xb8] sm:$0xff]
          %v318 = vld [vmem:[%s293 + $0xc0] sm:$0xff]
          %v319 = vld [vmem:[%s293 + $0xc8] sm:$0xff]
          %v320 = vld [vmem:[%s293 + $0xd0] sm:$0xff]
          %v321 = vld [vmem:[%s293 + $0xd8] sm:$0xff]
          %v322 = vld [vmem:[%s293 + $0xe0] sm:$0xff]
          %v323 = vld [vmem:[%s293 + $0xe8] sm:$0xff]
          %v324 = vld [vmem:[%s293 + $0xf0] sm:$0xff]
          %v325 = vld [vmem:[%s293 + $0xf8] sm:$0xff]
          %v326 = vsub.f32 %v261, %v294
          %v327 = vsub.f32 %v262, %v295
          %v328 = vsub.f32 %v263, %v296
          %v329 = vsub.f32 %v264, %v297
          %v330 = vsub.f32 %v265, %v298
          %v331 = vsub.f32 %v266, %v299
          %v332 = vsub.f32 %v267, %v300
          %v333 = vsub.f32 %v268, %v301
          %v334 = vsub.f32 %v269, %v302
          %v335 = vsub.f32 %v270, %v303
          %v336 = vsub.f32 %v271, %v304
          %v337 = vsub.f32 %v272, %v305
          %v338 = vsub.f32 %v273, %v306
          %v339 = vsub.f32 %v274, %v307
          %v340 = vsub.f32 %v275, %v308
          %v341 = vsub.f32 %v276, %v309
          %v342 = vsub.f32 %v277, %v310
          %v343 = vsub.f32 %v278, %v311
          %v344 = vsub.f32 %v279, %v312
          %v345 = vsub.f32 %v280, %v313
          %v346 = vsub.f32 %v281, %v314
          %v347 = vsub.f32 %v282, %v315
          %v348 = vsub.f32 %v283, %v316
          %v349 = vsub.f32 %v284, %v317
          %v350 = vsub.f32 %v285, %v318
          %v351 = vsub.f32 %v286, %v319
          %v352 = vsub.f32 %v287, %v320
          %v353 = vsub.f32 %v288, %v321
          %v354 = vsub.f32 %v289, %v322
          %v355 = vsub.f32 %v290, %v323
          %v356 = vsub.f32 %v291, %v324
          %v357 = vsub.f32 %v292, %v325
          %v358 = vmul.f32 %v326, %v326
          %v359 = vmul.f32 %v327, %v327
          %v360 = vmul.f32 %v328, %v328
          %v361 = vmul.f32 %v329, %v329
          %v362 = vmul.f32 %v330, %v330
          %v363 = vmul.f32 %v331, %v331
          %v364 = vmul.f32 %v332, %v332
          %v365 = vmul.f32 %v333, %v333
          %v366 = vmul.f32 %v334, %v334
          %v367 = vmul.f32 %v335, %v335
          %v368 = vmul.f32 %v336, %v336
          %v369 = vmul.f32 %v337, %v337
          %v370 = vmul.f32 %v338, %v338
          %v371 = vmul.f32 %v339, %v339
          %v372 = vmul.f32 %v340, %v340
          %v373 = vmul.f32 %v341, %v341
          %v374 = vmul.f32 %v342, %v342
          %v375 = vmul.f32 %v343, %v343
          %v376 = vmul.f32 %v344, %v344
          %v377 = vmul.f32 %v345, %v345
          %v378 = vmul.f32 %v346, %v346
          %v379 = vmul.f32 %v347, %v347
          %v380 = vmul.f32 %v348, %v348
          %v381 = vmul.f32 %v349, %v349
          %v382 = vmul.f32 %v350, %v350
          %v383 = vmul.f32 %v351, %v351
          %v384 = vmul.f32 %v352, %v352
          %v385 = vmul.f32 %v353, %v353
          %v386 = vmul.f32 %v354, %v354
          %v387 = vmul.f32 %v355, %v355
          %v388 = vmul.f32 %v356, %v356
          %v389 = vmul.f32 %v357, %v357
          %v390 = vlaneseq
          %v391 = vshrl.u32 %v390, 7
          %v392 = vadd.s32 %v391, 8
          %v393 = vadd.s32 %v391, 16
          %v394 = vadd.s32 %v391, 24
          %v395 = vadd.s32 %v391, 32
          %v396 = vadd.s32 %v391, 40
          %v397 = vadd.s32 %v391, 48
          %v398 = vadd.s32 %v391, 56
          %v399 = vadd.s32 %v391, 64
          %v400 = vadd.s32 %v391, 72
          %v401 = vadd.s32 %v391, 80
          %v402 = vadd.s32 %v391, 88
          %v403 = vadd.s32 %v391, 96
          %v404 = vadd.s32 %v391, 104
          %v405 = vadd.s32 %v391, 112
          %v406 = vadd.s32 %v391, 120
          %v407 = vadd.s32 %v391, 128
          %v408 = vadd.s32 %v391, 136
          %v409 = vadd.s32 %v391, 144
          %v410 = vadd.s32 %v391, 152
          %v411 = vadd.s32 %v391, 160
          %v412 = vadd.s32 %v391, 168
          %v413 = vadd.s32 %v391, 176
          %v414 = vadd.s32 %v391, 184
          %v415 = vadd.s32 %v391, 192
          %v416 = vadd.s32 %v391, 200
          %v417 = vadd.s32 %v391, 208
          %v418 = vadd.s32 %v391, 216
          %v419 = vadd.s32 %v391, 224
          %v420 = vadd.s32 %v391, 232
          %v421 = vadd.s32 %v391, 240
          %v422 = vadd.s32 %v391, 248
          %s423 = sadd.s32 %s252, %s259
          %v424 = vstv %s423
          %v425 = vadd.s32 %v391, %v424
          %v426 = vadd.s32 %v392, %v424
          %v427 = vadd.s32 %v393, %v424
          %v428 = vadd.s32 %v394, %v424
          %v429 = vadd.s32 %v395, %v424
          %v430 = vadd.s32 %v396, %v424
          %v431 = vadd.s32 %v397, %v424
          %v432 = vadd.s32 %v398, %v424
          %v433 = vadd.s32 %v399, %v424
          %v434 = vadd.s32 %v400, %v424
          %v435 = vadd.s32 %v401, %v424
          %v436 = vadd.s32 %v402, %v424
          %v437 = vadd.s32 %v403, %v424
          %v438 = vadd.s32 %v404, %v424
          %v439 = vadd.s32 %v405, %v424
          %v440 = vadd.s32 %v406, %v424
          %v441 = vadd.s32 %v407, %v424
          %v442 = vadd.s32 %v408, %v424
          %v443 = vadd.s32 %v409, %v424
          %v444 = vadd.s32 %v410, %v424
          %v445 = vadd.s32 %v411, %v424
          %v446 = vadd.s32 %v412, %v424
          %v447 = vadd.s32 %v413, %v424
          %v448 = vadd.s32 %v414, %v424
          %v449 = vadd.s32 %v415, %v424
          %v450 = vadd.s32 %v416, %v424
          %v451 = vadd.s32 %v417, %v424
          %v452 = vadd.s32 %v418, %v424
          %v453 = vadd.s32 %v419, %v424
          %v454 = vadd.s32 %v420, %v424
          %v455 = vadd.s32 %v421, %v424
          %v456 = vadd.s32 %v422, %v424
          %vm457 = vcmp.lt.s32.totalorder %v425, 576
          %vm458 = vcmp.lt.s32.totalorder %v426, 576
          %vm459 = vcmp.lt.s32.totalorder %v427, 576
          %vm460 = vcmp.lt.s32.totalorder %v428, 576
          %vm461 = vcmp.lt.s32.totalorder %v429, 576
          %vm462 = vcmp.lt.s32.totalorder %v430, 576
          %vm463 = vcmp.lt.s32.totalorder %v431, 576
          %vm464 = vcmp.lt.s32.totalorder %v432, 576
          %vm465 = vcmp.lt.s32.totalorder %v433, 576
          %vm466 = vcmp.lt.s32.totalorder %v434, 576
          %vm467 = vcmp.lt.s32.totalorder %v435, 576
          %vm468 = vcmp.lt.s32.totalorder %v436, 576
          %vm469 = vcmp.lt.s32.totalorder %v437, 576
          %vm470 = vcmp.lt.s32.totalorder %v438, 576
          %vm471 = vcmp.lt.s32.totalorder %v439, 576
          %vm472 = vcmp.lt.s32.totalorder %v440, 576
          %vm473 = vcmp.lt.s32.totalorder %v441, 576
          %vm474 = vcmp.lt.s32.totalorder %v442, 576
          %vm475 = vcmp.lt.s32.totalorder %v443, 576
          %vm476 = vcmp.lt.s32.totalorder %v444, 576
          %vm477 = vcmp.lt.s32.totalorder %v445, 576
          %vm478 = vcmp.lt.s32.totalorder %v446, 576
          %vm479 = vcmp.lt.s32.totalorder %v447, 576
          %vm480 = vcmp.lt.s32.totalorder %v448, 576
          %vm481 = vcmp.lt.s32.totalorder %v449, 576
          %vm482 = vcmp.lt.s32.totalorder %v450, 576
          %vm483 = vcmp.lt.s32.totalorder %v451, 576
          %vm484 = vcmp.lt.s32.totalorder %v452, 576
          %vm485 = vcmp.lt.s32.totalorder %v453, 576
          %vm486 = vcmp.lt.s32.totalorder %v454, 576
          %vm487 = vcmp.lt.s32.totalorder %v455, 576
          %vm488 = vcmp.lt.s32.totalorder %v456, 576
          %v489 = vsel %vm457, %v358, 0.0
          %v490 = vsel %vm458, %v359, 0.0
          %v491 = vsel %vm459, %v360, 0.0
          %v492 = vsel %vm460, %v361, 0.0
          %v493 = vsel %vm461, %v362, 0.0
          %v494 = vsel %vm462, %v363, 0.0
          %v495 = vsel %vm463, %v364, 0.0
          %v496 = vsel %vm464, %v365, 0.0
          %v497 = vsel %vm465, %v366, 0.0
          %v498 = vsel %vm466, %v367, 0.0
          %v499 = vsel %vm467, %v368, 0.0
          %v500 = vsel %vm468, %v369, 0.0
          %v501 = vsel %vm469, %v370, 0.0
          %v502 = vsel %vm470, %v371, 0.0
          %v503 = vsel %vm471, %v372, 0.0
          %v504 = vsel %vm472, %v373, 0.0
          %v505 = vsel %vm473, %v374, 0.0
          %v506 = vsel %vm474, %v375, 0.0
          %v507 = vsel %vm475, %v376, 0.0
          %v508 = vsel %vm476, %v377, 0.0
          %v509 = vsel %vm477, %v378, 0.0
          %v510 = vsel %vm478, %v379, 0.0
          %v511 = vsel %vm479, %v380, 0.0
          %v512 = vsel %vm480, %v381, 0.0
          %v513 = vsel %vm481, %v382, 0.0
          %v514 = vsel %vm482, %v383, 0.0
          %v515 = vsel %vm483, %v384, 0.0
          %v516 = vsel %vm484, %v385, 0.0
          %v517 = vsel %vm485, %v386, 0.0
          %v518 = vsel %vm486, %v387, 0.0
          %v519 = vsel %vm487, %v388, 0.0
          %v520 = vsel %vm488, %v389, 0.0
          %v521 = vld [vmem:[#allocation2] sm:$0xff]
          %v522 = vadd.f32 %v489, %v490
          %v523 = vadd.f32 %v522, %v491
          %v524 = vadd.f32 %v523, %v492
          %v525 = vadd.f32 %v524, %v493
          %v526 = vadd.f32 %v525, %v494
          %v527 = vadd.f32 %v526, %v495
          %v528 = vadd.f32 %v527, %v496
          %v529 = vadd.f32 %v528, %v497
          %v530 = vadd.f32 %v529, %v498
          %v531 = vadd.f32 %v530, %v499
          %v532 = vadd.f32 %v531, %v500
          %v533 = vadd.f32 %v532, %v501
          %v534 = vadd.f32 %v533, %v502
          %v535 = vadd.f32 %v534, %v503
          %v536 = vadd.f32 %v535, %v504
          %v537 = vadd.f32 %v536, %v505
          %v538 = vadd.f32 %v537, %v506
          %v539 = vadd.f32 %v538, %v507
          %v540 = vadd.f32 %v539, %v508
          %v541 = vadd.f32 %v540, %v509
          %v542 = vadd.f32 %v541, %v510
          %v543 = vadd.f32 %v542, %v511
          %v544 = vadd.f32 %v543, %v512
          %v545 = vadd.f32 %v544, %v513
          %v546 = vadd.f32 %v545, %v514
          %v547 = vadd.f32 %v546, %v515
          %v548 = vadd.f32 %v547, %v516
          %v549 = vadd.f32 %v548, %v517
          %v550 = vadd.f32 %v549, %v518
          %v551 = vadd.f32 %v550, %v519
          %v552 = vadd.f32 %v551, %v520
          %v553 = vadd.f32 %v521, %v552
          %554 = vst [vmem:[#allocation2] sm:$0xff] %v553
        $region45: #{tpu_custom_call.1} parent=27 // loop_footer
          %s258 = sadd.s32 1, %s254
        $region46: #{tpu_custom_call.1} parent=27 // loop_footer_branch
          %253 = sbr.rel target = $region42
        $region47: #{tpu_custom_call.1} parent=27 // loop_exit
          _
        %p555 = scmp.eq.s32.totalorder %s25, 1
        // Predicated region
        $region48: #{tpu_custom_call.1} parent=27 // pred_check
          %p556 = pneg %p555
        $region49: #{tpu_custom_call.1} parent=27 // pred_check_branch
          %558 = sbr.rel (%p556) target = $region51
        $region50: #{tpu_custom_call.1} parent=27 // pred_region
          %v559 = vld [vmem:[#allocation2] sm:$0xff]
          %v560 = vrot.slane %v559, 4
          %v561 = vadd.f32 %v559, %v560
          %v562 = vrot.slane %v561, 2
          %v563 = vadd.f32 %v561, %v562
          %v564 = vrot.slane %v563, 1
          %v565 = vadd.f32 %v563, %v564
          %566 = vadd.xlane.f32.xlu0 %v565
          %v567 = vpop.xlane.xlu0 %566
          %vm568 = vcmask 0
          %569 = vst.msk [vmem:[#allocation8] sm:$0x1] %vm568, %v567
        $region51: #{tpu_custom_call.1} parent=27 // pred_fallthru
          _
        // Predicated region
        $region52: #{tpu_custom_call.1} parent=27 // pred_check
          %p570 = pneg %p110
        $region53: #{tpu_custom_call.1} parent=27 // pred_check_branch
          %572 = sbr.rel (%p570) target = $region55
        $region54: #{tpu_custom_call.1} parent=27 // pred_region
          %s574 = ssub.s32 16, 16
          %575 = vsyncadd [#allocation5], %s574
          %s576 = smul.addr %s24, 16
          %s577 = scalar_lea.hbm %s2, %s576
          %s579 = sshll.u32 [#allocation8], 4
          %s580 = int_to_ptr.vmem [resolvable:$true] %s579
          %582 = dma.vmem_to_hbm [thread:$0]  %s580, 16, %s577, [#allocation5]
        $region55: #{tpu_custom_call.1} parent=27 // pred_fallthru
          _
        // Predicated region
        $region56: #{tpu_custom_call.1} parent=27 // pred_check
          %p583 = pneg %p110
        $region57: #{tpu_custom_call.1} parent=27 // pred_check_branch
          %585 = sbr.rel (%p583) target = $region59
        $region58: #{tpu_custom_call.1} parent=27 // pred_region
          %586 = dma.done [#allocation5], 16
        $region59: #{tpu_custom_call.1} parent=27 // pred_fallthru
          _
      $region28: #{tpu_custom_call.1} parent=5 // pred_fallthru
        _
      %p587 = scmp.le.s32.totalorder 2, %s15
      // Predicated region
      $region60: #{tpu_custom_call.1} parent=5 // pred_check
        %p588 = pneg %p587
      $region61: #{tpu_custom_call.1} parent=5 // pred_check_branch
        %590 = sbr.rel (%p588) target = $region63
      $region62: #{tpu_custom_call.1} parent=5 // pred_region
        %s591 = ssub.s32 %s15, 2
      $region63: #{tpu_custom_call.1} parent=5 // pred_fallthru
        _
    $region6: #{tpu_custom_call.1} parent=1 // loop_footer
      %s19 = sadd.s32 1, %s15
    $region7: #{tpu_custom_call.1} parent=1 // loop_footer_branch
      %14 = sbr.rel target = $region3
    $region8: #{tpu_custom_call.1} parent=1 // loop_exit
      _
    %592 = vsyncpa [#allocation4], 1
    %s593 = scalar_lea.sflag [#allocation4], 1
    %594 = vsyncpa %s593, 1
    %595 = vsyncpa [#allocation7], 1
    %s596 = scalar_lea.sflag [#allocation7], 1
    %597 = vsyncpa %s596, 1
    %598 = vsyncpa [#allocation5], 1
    %s599 = scalar_lea.sflag [#allocation5], 1
    %600 = vsyncpa %s599, 1

</llo_original>
